<compile_context>
chip_gen: v7x
topology: tpu7x:2x2x1
jax: 0.10.0
libtpu: 0.0.40
codegen_flags: <defaults>
</compile_context>

<pallas_src>
import jax
import jax.numpy as jnp
from jax.experimental import pallas as pl
from jax.experimental.pallas import tpu as pltpu

H1, H2 = 30, 20  # hidden widths from the PyTorch module


def _round_up(n: int, m: int) -> int:
    return ((n + m - 1) // m) * m


def mlp_kernel(x_ref, w1_ref, b1_ref, w2_ref, b2_ref, w3_ref, b3_ref, o_ref):
    """One batch tile: fused matmul + bias + ReLU chain. Weights stay VMEM-resident."""
    # Cast x to the matmul dtype in-kernel (before the first dot -> bf16 MXU path kept);
    # the HBM input stream stays f32, avoiding a separate wrapper-side cast pass.
    x = x_ref[...].astype(w1_ref.dtype)

    # Layer 1: Linear(num_inputs -> 30[pad 32]) + ReLU  (f32 accumulate)
    h1 = jnp.dot(x, w1_ref[...], preferred_element_type=jnp.float32) + b1_ref[...]
    h1 = jnp.maximum(h1, 0.0).astype(w2_ref.dtype)

    # Layer 2: Linear(30 -> 20[pad 32]) + ReLU
    h2 = jnp.dot(h1, w2_ref[...], preferred_element_type=jnp.float32) + b2_ref[...]
    h2 = jnp.maximum(h2, 0.0).astype(w3_ref.dtype)

    # Layer 3: Linear(20 -> num_outputs). Matmul runs at 128 lanes (MXU-native w3), but only
    # the narrow valid slab is stored -> masked vst, ~num_outputs*4 B/row of HBM writeback.
    logits = jnp.dot(h2, w3_ref[...], preferred_element_type=jnp.float32) + b3_ref[...]
    o_ref[...] = logits[:, : o_ref.shape[1]].astype(o_ref.dtype)


def prepare_params(params, compute_dtype=jnp.bfloat16):
    """One-time param packing: transpose to (in, out), pad ragged dims, cast matmul inputs.

    Padding: hidden 30 -> 32, hidden 20 -> 32, output -> 128 for the MXU weight only; the HBM
    store width is round_up(num_outputs, 8).  Zero padding is exact: padded bias entries are 0,
    ReLU(0)=0, and zero rows/cols contribute 0 to subsequent matmuls.
    """
    num_inputs = params["w1"].shape[1]
    num_outputs = params["w3"].shape[0]
    h1p = _round_up(H1, 8)                   # 32
    h2p = _round_up(H2, 8)                   # 32
    outp_mxu = _round_up(num_outputs, 128)   # MXU-friendly weight width
    outp_store = _round_up(num_outputs, 8)   # narrow HBM store width

    def pad2(a, rows, cols, dtype):
        return jnp.zeros((rows, cols), dtype).at[: a.shape[0], : a.shape[1]].set(
            a.astype(dtype))

    w1 = pad2(params["w1"].T, num_inputs, h1p, compute_dtype)   # (in, 32)
    w2 = pad2(params["w2"].T, h1p, h2p, compute_dtype)          # (32, 32)
    w3 = pad2(params["w3"].T, h2p, outp_mxu, compute_dtype)     # (32, 128)
    b1 = pad2(params["b1"][None, :], 1, h1p, jnp.float32)       # (1, 32)
    b2 = pad2(params["b2"][None, :], 1, h2p, jnp.float32)       # (1, 32)
    b3 = pad2(params["b3"][None, :], 1, outp_mxu, jnp.float32)  # (1, 128)

    return dict(w1=w1, b1=b1, w2=w2, b2=b2, w3=w3, b3=b3,
                num_inputs=num_inputs, num_outputs=num_outputs,
                outp_store=outp_store, compute_dtype=compute_dtype)


def neural_network_forward(x, prepared, *, block_batch=4096):
    """Wrapper mirroring NeuralNetwork.forward(x) -> logits.

    x: (batch, num_inputs) float32
    prepared: output of prepare_params().
    """
    w1, b1 = prepared["w1"], prepared["b1"]
    w2, b2 = prepared["w2"], prepared["b2"]
    w3, b3 = prepared["w3"], prepared["b3"]
    num_inputs = prepared["num_inputs"]
    num_outputs = prepared["num_outputs"]
    outp_store = prepared["outp_store"]
    compute_dtype = prepared["compute_dtype"]
    h1p, h2p, outp_mxu = w1.shape[1], w2.shape[1], w3.shape[1]

    batch = x.shape[0]
    batch8 = _round_up(max(batch, 1), 8)

    # Batch tile: cap at block_batch, but prefer >=2 grid steps so both v7x TensorCores get
    # work under dimension_semantics=("parallel",).
    tb = max(8, min(_round_up(block_batch, 8), _round_up(pl.cdiv(batch8, 2), 8)))

    # Clamp so the per-step VMEM footprint (double-buffered streams + activations) stays
    # comfortably inside every generation's scoped VMEM budget.
    cbytes = jnp.dtype(compute_dtype).itemsize
    bytes_per_row = (num_inputs * (4 * 2 + cbytes)   # x (f32, double-buffered) + in-kernel cast
                     + (h1p + h2p) * (4 + cbytes)    # hidden activations (f32 + compute dtype)
                     + outp_mxu * 4                  # 128-lane logits accumulator
                     + outp_store * 4 * 2)           # output (f32, double-buffered)
    max_tb = max(8, (12 * 1024 * 1024 // bytes_per_row) // 8 * 8)
    tb = min(tb, max_tb)

    padded_batch = _round_up(batch, tb)
    if padded_batch != batch:
        # Single f32 pass only when the batch is ragged; no separate cast pass follows.
        x = jnp.pad(x, ((0, padded_batch - batch), (0, 0)))

    grid = (padded_batch // tb,)
    resident = lambda shape: pl.BlockSpec(shape, lambda i: tuple(0 for _ in shape))

    out_padded = pl.pallas_call(
        mlp_kernel,
        out_shape=jax.ShapeDtypeStruct((padded_batch, outp_store), jnp.float32),
        grid_spec=pltpu.PrefetchScalarGridSpec(
            num_scalar_prefetch=0,
            grid=grid,
            in_specs=[
                pl.BlockSpec((tb, num_inputs), lambda i: (i, 0)),  # pipelined over batch
                resident(w1.shape), resident(b1.shape),            # VMEM-resident params
                resident(w2.shape), resident(b2.shape),
                resident(w3.shape), resident(b3.shape),
            ],
            out_specs=pl.BlockSpec((tb, outp_store), lambda i: (i, 0)),  # narrow store
        ),
        compiler_params=pltpu.CompilerParams(
            dimension_semantics=("parallel",),      # megacore split of the batch axis (v7x)
            vmem_limit_bytes=32 * 1024 * 1024,      # explicit scoped-VMEM bound, safe on all gens
        ),
    )(x, w1, b1, w2, b2, w3, b3)

    return out_padded[:batch, :num_outputs]


def init_params(key, num_inputs, num_outputs):
    """Deterministic synthetic parameters with PyTorch nn.Linear shapes.

    w: (out_features, in_features), b: (out_features,)
    """
    dims = [(H1, num_inputs), (H2, H1), (num_outputs, H2)]
    params = {}
    for i, (out_f, in_f) in enumerate(dims, start=1):
        key, kw, kb = jax.random.split(key, 3)
        bound = 1.0 / jnp.sqrt(in_f)  # matches PyTorch's default uniform bound
        params[f"w{i}"] = jax.random.uniform(
            kw, (out_f, in_f), jnp.float32, minval=-bound, maxval=bound)
        params[f"b{i}"] = jax.random.uniform(
            kb, (out_f,), jnp.float32, minval=-bound, maxval=bound)
    return params


def reference_forward(x, params):
    """Pure-JAX reference of the PyTorch forward, for correctness checking."""
    h = jnp.maximum(x @ params["w1"].T + params["b1"], 0.0)
    h = jnp.maximum(h @ params["w2"].T + params["b2"], 0.0)
    return h @ params["w3"].T + params["b3"]


if __name__ == "__main__":
    num_inputs, num_outputs = 8, 4

    key = jax.random.PRNGKey(0)
    key, kx, kx2 = jax.random.split(key, 3)
    params = init_params(key, num_inputs, num_outputs)

    # Ragged batch (exercises the pad + 2-step grid path).
    x = jax.random.normal(kx, (300, num_inputs), dtype=jnp.float32)
    ref = reference_forward(x, params)

    # f32 compute path: tight numerical check of the kernel structure (tiling, padding, bias).
    prep_f32 = prepare_params(params, compute_dtype=jnp.float32)
    logits_f32 = neural_network_forward(x, prep_f32)
    jax.block_until_ready(logits_f32)
    assert logits_f32.shape == (300, num_outputs)
    assert jnp.allclose(logits_f32, ref, atol=1e-4, rtol=1e-4)

    # bf16 compute path (perf-preferred): looser tolerance vs f32 reference.
    prep_bf16 = prepare_params(params, compute_dtype=jnp.bfloat16)
    logits_bf16 = neural_network_forward(x, prep_bf16)
    jax.block_until_ready(logits_bf16)
    assert logits_bf16.shape == (300, num_outputs)
    assert jnp.allclose(logits_bf16, ref, atol=2e-1, rtol=1e-1)

    # Aligned batch (no-pad path, grid of 2 tiles).
    x2 = jax.random.normal(kx2, (512, num_inputs), dtype=jnp.float32)
    ref2 = reference_forward(x2, params)
    logits2 = neural_network_forward(x2, prep_f32)
    jax.block_until_ready(logits2)
    assert logits2.shape == (512, num_outputs)
    assert jnp.allclose(logits2, ref2, atol=1e-4, rtol=1e-4)

    print("KERNEL_OK")
</pallas_src>

<mosaic_0001>
module attributes {stable_mosaic.version = 11 : i64} {
  func.func @mlp_kernel(%arg0: i32, %arg1: memref<152x8xf32, #tpu.memory_space<vmem>>, %arg2: memref<8x32xf32, #tpu.memory_space<vmem>>, %arg3: memref<1x32xf32, #tpu.memory_space<vmem>>, %arg4: memref<32x24xf32, #tpu.memory_space<vmem>>, %arg5: memref<1x24xf32, #tpu.memory_space<vmem>>, %arg6: memref<24x128xf32, #tpu.memory_space<vmem>>, %arg7: memref<1x128xf32, #tpu.memory_space<vmem>>, %arg8: memref<152x8xf32, #tpu.memory_space<vmem>>) attributes {dimension_semantics = [#tpu.dimension_semantics<parallel>], iteration_bounds = array<i64: 2>, scalar_prefetch = 0 : i64, scratch_operands = 0 : i64, tpu.core_type = #tpu.core_type<tc>, window_params = [{transform_indices = @transform_0, window_bounds = array<i64: 152, 8>}, {pipeline_mode = #tpu.pipeline_mode<synchronous>, transform_indices = @transform_1, window_bounds = array<i64: 8, 32>}, {pipeline_mode = #tpu.pipeline_mode<synchronous>, transform_indices = @transform_2, window_bounds = array<i64: 1, 32>}, {pipeline_mode = #tpu.pipeline_mode<synchronous>, transform_indices = @transform_3, window_bounds = array<i64: 32, 24>}, {pipeline_mode = #tpu.pipeline_mode<synchronous>, transform_indices = @transform_4, window_bounds = array<i64: 1, 24>}, {pipeline_mode = #tpu.pipeline_mode<synchronous>, transform_indices = @transform_5, window_bounds = array<i64: 24, 128>}, {pipeline_mode = #tpu.pipeline_mode<synchronous>, transform_indices = @transform_6, window_bounds = array<i64: 1, 128>}, {transform_indices = @transform_7, window_bounds = array<i64: 152, 8>}]} {
    %c0 = arith.constant 0 : index
    %c0_0 = arith.constant 0 : index
    %0 = vector.load %arg1[%c0, %c0_0] : memref<152x8xf32, #tpu.memory_space<vmem>>, vector<152x8xf32>
    %c0_1 = arith.constant 0 : index
    %c0_2 = arith.constant 0 : index
    %1 = vector.load %arg2[%c0_1, %c0_2] : memref<8x32xf32, #tpu.memory_space<vmem>>, vector<8x32xf32>
    %cst = arith.constant dense<0.000000e+00> : vector<152x32xf32>
    %2 = tpu.matmul %0, %1, %cst {dimension_numbers = #tpu.dot_dimension_numbers<[1], [0], [0], [1], [0, 0, 1, 1], [], []>} : vector<152x8xf32>, vector<8x32xf32>, vector<152x32xf32> -> vector<152x32xf32>
    %c0_3 = arith.constant 0 : index
    %c0_4 = arith.constant 0 : index
    %3 = vector.load %arg3[%c0_3, %c0_4] : memref<1x32xf32, #tpu.memory_space<vmem>>, vector<1x32xf32>
    %4 = vector.broadcast %3 : vector<1x32xf32> to vector<152x32xf32>
    %5 = arith.addf %2, %4 : vector<152x32xf32>
    %cst_5 = arith.constant 0.000000e+00 : f32
    %6 = vector.broadcast %cst_5 : f32 to vector<152x32xf32>
    %7 = arith.maximumf %5, %6 : vector<152x32xf32>
    %c0_6 = arith.constant 0 : index
    %c0_7 = arith.constant 0 : index
    %8 = vector.load %arg4[%c0_6, %c0_7] : memref<32x24xf32, #tpu.memory_space<vmem>>, vector<32x24xf32>
    %cst_8 = arith.constant dense<0.000000e+00> : vector<152x24xf32>
    %9 = tpu.matmul %7, %8, %cst_8 {dimension_numbers = #tpu.dot_dimension_numbers<[1], [0], [0], [1], [0, 0, 1, 1], [], []>} : vector<152x32xf32>, vector<32x24xf32>, vector<152x24xf32> -> vector<152x24xf32>
    %c0_9 = arith.constant 0 : index
    %c0_10 = arith.constant 0 : index
    %10 = vector.load %arg5[%c0_9, %c0_10] : memref<1x24xf32, #tpu.memory_space<vmem>>, vector<1x24xf32>
    %11 = vector.broadcast %10 : vector<1x24xf32> to vector<152x24xf32>
    %12 = arith.addf %9, %11 : vector<152x24xf32>
    %cst_11 = arith.constant 0.000000e+00 : f32
    %13 = vector.broadcast %cst_11 : f32 to vector<152x24xf32>
    %14 = arith.maximumf %12, %13 : vector<152x24xf32>
    %c0_12 = arith.constant 0 : index
    %c0_13 = arith.constant 0 : index
    %15 = vector.load %arg6[%c0_12, %c0_13] : memref<24x128xf32, #tpu.memory_space<vmem>>, vector<24x128xf32>
    %cst_14 = arith.constant dense<0.000000e+00> : vector<152x128xf32>
    %16 = tpu.matmul %14, %15, %cst_14 {dimension_numbers = #tpu.dot_dimension_numbers<[1], [0], [0], [1], [0, 0, 1, 1], [], []>} : vector<152x24xf32>, vector<24x128xf32>, vector<152x128xf32> -> vector<152x128xf32>
    %c0_15 = arith.constant 0 : index
    %c0_16 = arith.constant 0 : index
    %17 = vector.load %arg7[%c0_15, %c0_16] : memref<1x128xf32, #tpu.memory_space<vmem>>, vector<1x128xf32>
    %18 = vector.broadcast %17 : vector<1x128xf32> to vector<152x128xf32>
    %19 = arith.addf %16, %18 : vector<152x128xf32>
    %20 = vector.extract_strided_slice %19 {offsets = [0, 0], sizes = [152, 8], strides = [1, 1]} : vector<152x128xf32> to vector<152x8xf32>
    %c0_17 = arith.constant 0 : index
    %c0_18 = arith.constant 0 : index
    %21 = vector.load %arg8[%c0_17, %c0_18] : memref<152x8xf32, #tpu.memory_space<vmem>>, vector<152x8xf32>
    tpu.vector_store %arg8[%c0_17, %c0_18], %20 {strides = array<i32>} : memref<152x8xf32, #tpu.memory_space<vmem>>, vector<152x8xf32>,
    return
  }
  func.func @transform_0(%arg0: i32) -> (i32, i32) {
    %c0_i32 = arith.constant 0 : i32
    %c0_i32_0 = arith.constant 0 : i32
    return %arg0, %c0_i32 : i32, i32
  }
  func.func @transform_1(%arg0: i32) -> (i32, i32) {
    %c0_i32 = arith.constant 0 : i32
    %c0_i32_0 = arith.constant 0 : i32
    %c0_i32_1 = arith.constant 0 : i32
    return %c0_i32, %c0_i32_0 : i32, i32
  }
  func.func @transform_2(%arg0: i32) -> (i32, i32) {
    %c0_i32 = arith.constant 0 : i32
    %c0_i32_0 = arith.constant 0 : i32
    %c0_i32_1 = arith.constant 0 : i32
    return %c0_i32, %c0_i32_0 : i32, i32
  }
  func.func @transform_3(%arg0: i32) -> (i32, i32) {
    %c0_i32 = arith.constant 0 : i32
    %c0_i32_0 = arith.constant 0 : i32
    %c0_i32_1 = arith.constant 0 : i32
    return %c0_i32, %c0_i32_0 : i32, i32
  }
  func.func @transform_4(%arg0: i32) -> (i32, i32) {
    %c0_i32 = arith.constant 0 : i32
    %c0_i32_0 = arith.constant 0 : i32
    %c0_i32_1 = arith.constant 0 : i32
    return %c0_i32, %c0_i32_0 : i32, i32
  }
  func.func @transform_5(%arg0: i32) -> (i32, i32) {
    %c0_i32 = arith.constant 0 : i32
    %c0_i32_0 = arith.constant 0 : i32
    %c0_i32_1 = arith.constant 0 : i32
    return %c0_i32, %c0_i32_0 : i32, i32
  }
  func.func @transform_6(%arg0: i32) -> (i32, i32) {
    %c0_i32 = arith.constant 0 : i32
    %c0_i32_0 = arith.constant 0 : i32
    %c0_i32_1 = arith.constant 0 : i32
    return %c0_i32, %c0_i32_0 : i32, i32
  }
  func.func @transform_7(%arg0: i32) -> (i32, i32) {
    %c0_i32 = arith.constant 0 : i32
    %c0_i32_0 = arith.constant 0 : i32
    return %arg0, %c0_i32 : i32, i32
  }
}

</mosaic_0001>

<llo_original>
// kernel: tpu_custom_call.1
$region0: #{tpu_custom_call.1}
  #allocation0 [shape = 'u32[]', space=smem, size = 0x4, offset = 0x4, fixed_abs, tag = 'smem constant byte address 0x4 - core index']
  #allocation1 [shape = 'u32[144,128]{1,0:T(1,128)}', space=vmem, size = 0x12000, scoped, tag = 'internal scratch']
  %s0 = inlined_call_operand.vmem [shape: f32[304,8], index: 0, kind: input, shape index: {}]
  %s1 = inlined_call_operand.vmem [shape: f32[8,32], index: 1, kind: input, shape index: {}]
  %s2 = inlined_call_operand.vmem [shape: f32[1,32], index: 2, kind: input, shape index: {}]
  %s3 = inlined_call_operand.vmem [shape: f32[32,24], index: 3, kind: input, shape index: {}]
  %s4 = inlined_call_operand.vmem [shape: f32[1,24], index: 4, kind: input, shape index: {}]
  %s5 = inlined_call_operand.vmem [shape: f32[24,128], index: 5, kind: input, shape index: {}]
  %s6 = inlined_call_operand.vmem [shape: f32[1,128], index: 6, kind: input, shape index: {}]
  %s7 = inlined_call_operand.vmem [shape: f32[304,8], index: 7, kind: output, shape index: {}]
  %s8 = sld [smem:[#allocation0]]
  $region61: #{tpu_custom_call.1} parent=0
    _
  %s10 = ssub.s32 1, %s8
  %s11 = scalar_select 0, %s10, %s8
  loop: start=0, step=1, limit=4
  $region2: #{tpu_custom_call.1} parent=0 // loop_pre_header
    _
  $region3: #{tpu_custom_call.1} parent=0 // loop_header
    %s13 = sphi 0, %s17
    %p14 = scmp.ge.s32.totalorder %s13, 4
    %s23 = sphi 0, %s25
    %s26 = sphi 0, %s23
    %s27 = sphi 0, %s26
    %s43 = sphi 0, %s27
    %s47 = sphi 0, %s47
    %s49 = sphi 0, %s47
    %s50 = sphi 0, %s49
    %s64 = sphi 0, %s50
    %s68 = sphi 0, %s68
    %s70 = sphi 0, %s68
    %s71 = sphi 0, %s70
    %s85 = sphi 0, %s71
    %s89 = sphi 0, %s89
    %s91 = sphi 0, %s89
    %s92 = sphi 0, %s91
    %s106 = sphi 0, %s92
    %s110 = sphi 0, %s110
    %s112 = sphi 0, %s110
    %s113 = sphi 0, %s112
    %s127 = sphi 0, %s113
    %s131 = sphi 0, %s131
    %s133 = sphi 0, %s131
    %s134 = sphi 0, %s133
    %s148 = sphi 0, %s134
    %s152 = sphi 0, %s152
    %s154 = sphi 0, %s152
    %s155 = sphi 0, %s154
    %s169 = sphi 0, %s155
    %s175 = sphi 0, %s177
    %s178 = sphi 0, %s175
    %s179 = sphi 0, %s178
    %s195 = sphi 0, %s179
  $region4: #{tpu_custom_call.1} parent=0 // loop_header_branch
    %16 = sbr.rel (%p14) target = $region8
  $region5: #{tpu_custom_call.1} parent=0 // loop_body
    %s18 = ssub.s32 %s13, 1
    %s19 = ssub.s32 %s13, 2
    %s20 = sadd.s32 %s13, 1
    %s21 = ssub.s32 %s13, %s20
    %p22 = scmp.eq.s32.totalorder %s21, 0
    %s24 = sadd.s32 %s23, 1
    %s25 = scalar_select %p22, %s23, %s24
    %p28 = pneg %p22
    %p29 = scmp.eq.s32.totalorder %s13, 1
    %p30 = por %p28, %p29
    %p31 = scmp.ne.s32.totalorder %s23, %s26
    %p32 = scmp.eq.s32.totalorder %s13, 0
    %p33 = por %p31, %p32
    %p34 = scmp.ne.s32.totalorder %s23, %s26
    %p35 = scmp.eq.s32.totalorder %s18, 1
    %p36 = por %p34, %p35
    %p37 = scmp.ne.s32.totalorder %s26, %s27
    %p38 = scmp.eq.s32.totalorder %s18, 0
    %p39 = por %p37, %p38
    %p40 = scmp.ne.s32.totalorder %s26, %s27
    %p41 = scmp.eq.s32.totalorder %s19, 1
    %p42 = por %p40, %p41
    %p44 = scmp.ne.s32.totalorder %s27, %s43
    %p45 = scmp.eq.s32.totalorder %s19, 0
    %p46 = por %p44, %p45
    %s48 = sadd.s32 %s47, 1
    %p51 = scmp.eq.s32.totalorder %s13, 1
    %p52 = scmp.ne.s32.totalorder %s47, %s49
    %p53 = scmp.eq.s32.totalorder %s13, 0
    %p54 = por %p52, %p53
    %p55 = scmp.ne.s32.totalorder %s47, %s49
    %p56 = scmp.eq.s32.totalorder %s18, 1
    %p57 = por %p55, %p56
    %p58 = scmp.ne.s32.totalorder %s49, %s50
    %p59 = scmp.eq.s32.totalorder %s18, 0
    %p60 = por %p58, %p59
    %p61 = scmp.ne.s32.totalorder %s49, %s50
    %p62 = scmp.eq.s32.totalorder %s19, 1
    %p63 = por %p61, %p62
    %p65 = scmp.ne.s32.totalorder %s50, %s64
    %p66 = scmp.eq.s32.totalorder %s19, 0
    %p67 = por %p65, %p66
    %s69 = sadd.s32 %s68, 1
    %p72 = scmp.eq.s32.totalorder %s13, 1
    %p73 = scmp.ne.s32.totalorder %s68, %s70
    %p74 = scmp.eq.s32.totalorder %s13, 0
    %p75 = por %p73, %p74
    %p76 = scmp.ne.s32.totalorder %s68, %s70
    %p77 = scmp.eq.s32.totalorder %s18, 1
    %p78 = por %p76, %p77
    %p79 = scmp.ne.s32.totalorder %s70, %s71
    %p80 = scmp.eq.s32.totalorder %s18, 0
    %p81 = por %p79, %p80
    %p82 = scmp.ne.s32.totalorder %s70, %s71
    %p83 = scmp.eq.s32.totalorder %s19, 1
    %p84 = por %p82, %p83
    %p86 = scmp.ne.s32.totalorder %s71, %s85
    %p87 = scmp.eq.s32.totalorder %s19, 0
    %p88 = por %p86, %p87
    %s90 = sadd.s32 %s89, 1
    %p93 = scmp.eq.s32.totalorder %s13, 1
    %p94 = scmp.ne.s32.totalorder %s89, %s91
    %p95 = scmp.eq.s32.totalorder %s13, 0
    %p96 = por %p94, %p95
    %p97 = scmp.ne.s32.totalorder %s89, %s91
    %p98 = scmp.eq.s32.totalorder %s18, 1
    %p99 = por %p97, %p98
    %p100 = scmp.ne.s32.totalorder %s91, %s92
    %p101 = scmp.eq.s32.totalorder %s18, 0
    %p102 = por %p100, %p101
    %p103 = scmp.ne.s32.totalorder %s91, %s92
    %p104 = scmp.eq.s32.totalorder %s19, 1
    %p105 = por %p103, %p104
    %p107 = scmp.ne.s32.totalorder %s92, %s106
    %p108 = scmp.eq.s32.totalorder %s19, 0
    %p109 = por %p107, %p108
    %s111 = sadd.s32 %s110, 1
    %p114 = scmp.eq.s32.totalorder %s13, 1
    %p115 = scmp.ne.s32.totalorder %s110, %s112
    %p116 = scmp.eq.s32.totalorder %s13, 0
    %p117 = por %p115, %p116
    %p118 = scmp.ne.s32.totalorder %s110, %s112
    %p119 = scmp.eq.s32.totalorder %s18, 1
    %p120 = por %p118, %p119
    %p121 = scmp.ne.s32.totalorder %s112, %s113
    %p122 = scmp.eq.s32.totalorder %s18, 0
    %p123 = por %p121, %p122
    %p124 = scmp.ne.s32.totalorder %s112, %s113
    %p125 = scmp.eq.s32.totalorder %s19, 1
    %p126 = por %p124, %p125
    %p128 = scmp.ne.s32.totalorder %s113, %s127
    %p129 = scmp.eq.s32.totalorder %s19, 0
    %p130 = por %p128, %p129
    %s132 = sadd.s32 %s131, 1
    %p135 = scmp.eq.s32.totalorder %s13, 1
    %p136 = scmp.ne.s32.totalorder %s131, %s133
    %p137 = scmp.eq.s32.totalorder %s13, 0
    %p138 = por %p136, %p137
    %p139 = scmp.ne.s32.totalorder %s131, %s133
    %p140 = scmp.eq.s32.totalorder %s18, 1
    %p141 = por %p139, %p140
    %p142 = scmp.ne.s32.totalorder %s133, %s134
    %p143 = scmp.eq.s32.totalorder %s18, 0
    %p144 = por %p142, %p143
    %p145 = scmp.ne.s32.totalorder %s133, %s134
    %p146 = scmp.eq.s32.totalorder %s19, 1
    %p147 = por %p145, %p146
    %p149 = scmp.ne.s32.totalorder %s134, %s148
    %p150 = scmp.eq.s32.totalorder %s19, 0
    %p151 = por %p149, %p150
    %s153 = sadd.s32 %s152, 1
    %p156 = scmp.eq.s32.totalorder %s13, 1
    %p157 = scmp.ne.s32.totalorder %s152, %s154
    %p158 = scmp.eq.s32.totalorder %s13, 0
    %p159 = por %p157, %p158
    %p160 = scmp.ne.s32.totalorder %s152, %s154
    %p161 = scmp.eq.s32.totalorder %s18, 1
    %p162 = por %p160, %p161
    %p163 = scmp.ne.s32.totalorder %s154, %s155
    %p164 = scmp.eq.s32.totalorder %s18, 0
    %p165 = por %p163, %p164
    %p166 = scmp.ne.s32.totalorder %s154, %s155
    %p167 = scmp.eq.s32.totalorder %s19, 1
    %p168 = por %p166, %p167
    %p170 = scmp.ne.s32.totalorder %s155, %s169
    %p171 = scmp.eq.s32.totalorder %s19, 0
    %p172 = por %p170, %p171
    %s173 = ssub.s32 %s13, %s20
    %p174 = scmp.eq.s32.totalorder %s173, 0
    %s176 = sadd.s32 %s175, 1
    %s177 = scalar_select %p174, %s175, %s176
    %p180 = pneg %p174
    %p181 = scmp.eq.s32.totalorder %s13, 1
    %p182 = por %p180, %p181
    %p183 = scmp.ne.s32.totalorder %s175, %s178
    %p184 = scmp.eq.s32.totalorder %s13, 0
    %p185 = por %p183, %p184
    %p186 = scmp.ne.s32.totalorder %s175, %s178
    %p187 = scmp.eq.s32.totalorder %s18, 1
    %p188 = por %p186, %p187
    %p189 = scmp.ne.s32.totalorder %s178, %s179
    %p190 = scmp.eq.s32.totalorder %s18, 0
    %p191 = por %p189, %p190
    %p192 = scmp.ne.s32.totalorder %s178, %s179
    %p193 = scmp.eq.s32.totalorder %s19, 1
    %p194 = por %p192, %p193
    %p196 = scmp.ne.s32.totalorder %s179, %s195
    %p197 = scmp.eq.s32.totalorder %s19, 0
    %p198 = por %p196, %p197
    %p199 = scmp.le.s32.totalorder 1, %s13
    %p200 = scmp.lt.s32.totalorder %s13, 3
    %p201 = pnand %p199, %p200
    %p202 = pneg %p201
    // Predicated region
    $region9: #{tpu_custom_call.1} parent=5 // pred_check
      _
    $region10: #{tpu_custom_call.1} parent=5 // pred_check_branch
      %204 = sbr.rel (%p201) target = $region12
    $region11: #{tpu_custom_call.1} parent=5 // pred_region
      %s205 = ssub.s32 %s13, 1
      // Predicated region
      $region13: #{tpu_custom_call.1} parent=11 // pred_check
        %p206 = pneg %p60
      $region14: #{tpu_custom_call.1} parent=11 // pred_check_branch
        %208 = sbr.rel (%p206) target = $region16
      $region15: #{tpu_custom_call.1} parent=11 // pred_region
        _
      $region16: #{tpu_custom_call.1} parent=11 // pred_fallthru
        _
      // Predicated region
      $region17: #{tpu_custom_call.1} parent=11 // pred_check
        %p209 = pneg %p81
      $region18: #{tpu_custom_call.1} parent=11 // pred_check_branch
        %211 = sbr.rel (%p209) target = $region20
      $region19: #{tpu_custom_call.1} parent=11 // pred_region
        _
      $region20: #{tpu_custom_call.1} parent=11 // pred_fallthru
        _
      // Predicated region
      $region21: #{tpu_custom_call.1} parent=11 // pred_check
        %p212 = pneg %p102
      $region22: #{tpu_custom_call.1} parent=11 // pred_check_branch
        %214 = sbr.rel (%p212) target = $region24
      $region23: #{tpu_custom_call.1} parent=11 // pred_region
        _
      $region24: #{tpu_custom_call.1} parent=11 // pred_fallthru
        _
      // Predicated region
      $region25: #{tpu_custom_call.1} parent=11 // pred_check
        %p215 = pneg %p123
      $region26: #{tpu_custom_call.1} parent=11 // pred_check_branch
        %217 = sbr.rel (%p215) target = $region28
      $region27: #{tpu_custom_call.1} parent=11 // pred_region
        _
      $region28: #{tpu_custom_call.1} parent=11 // pred_fallthru
        _
      // Predicated region
      $region29: #{tpu_custom_call.1} parent=11 // pred_check
        %p218 = pneg %p144
      $region30: #{tpu_custom_call.1} parent=11 // pred_check_branch
        %220 = sbr.rel (%p218) target = $region32
      $region31: #{tpu_custom_call.1} parent=11 // pred_region
        _
      $region32: #{tpu_custom_call.1} parent=11 // pred_fallthru
        _
      // Predicated region
      $region33: #{tpu_custom_call.1} parent=11 // pred_check
        %p221 = pneg %p165
      $region34: #{tpu_custom_call.1} parent=11 // pred_check_branch
        %223 = sbr.rel (%p221) target = $region36
      $region35: #{tpu_custom_call.1} parent=11 // pred_region
        _
      $region36: #{tpu_custom_call.1} parent=11 // pred_fallthru
        _
    $region12: #{tpu_custom_call.1} parent=5 // pred_fallthru
      _
    %p224 = scmp.lt.s32.totalorder %s13, 2
    // Predicated region
    $region37: #{tpu_custom_call.1} parent=5 // pred_check
      %p225 = pneg %p224
    $region38: #{tpu_custom_call.1} parent=5 // pred_check_branch
      %227 = sbr.rel (%p225) target = $region40
    $region39: #{tpu_custom_call.1} parent=5 // pred_region
      // Predicated region
      $region41: #{tpu_custom_call.1} parent=39 // pred_check
        %p228 = pneg %p33
      $region42: #{tpu_custom_call.1} parent=39 // pred_check_branch
        %230 = sbr.rel (%p228) target = $region44
      $region43: #{tpu_custom_call.1} parent=39 // pred_region
        %s231 = smul.u32 19, %s13
        %p232 = scmp.lt.s32.totalorder %s231, 37
        %s233 = scalar_select %p232, %s231, 37
        %s234 = smul.addr %s233, 8
        %s235 = scalar_lea.vmem %s0, %s234
        %s236 = smul.u32 19, %s13
      $region44: #{tpu_custom_call.1} parent=39 // pred_fallthru
        _
    $region40: #{tpu_custom_call.1} parent=5 // pred_fallthru
      _
    %p237 = scmp.le.s32.totalorder 1, %s13
    %p238 = scmp.lt.s32.totalorder %s13, 3
    %p239 = pnand %p237, %p238
    %p240 = pneg %p239
    // Predicated region
    $region45: #{tpu_custom_call.1} parent=5 // pred_check
      _
    $region46: #{tpu_custom_call.1} parent=5 // pred_check_branch
      %242 = sbr.rel (%p239) target = $region48
    $region47: #{tpu_custom_call.1} parent=5 // pred_region
      %s243 = ssub.s32 %s13, 1
      %s244 = smul.u32 19, %s18
      %p245 = scmp.lt.s32.totalorder %s244, 37
      %s246 = scalar_select %p245, %s244, 37
      %s247 = smul.addr %s246, 8
      %s248 = scalar_lea.vmem %s0, %s247
      %p249 = pneg %p39
      %p250 = pneg %p36
      %p251 = pneg %p60
      %p252 = pneg %p57
      %p253 = pneg %p81
      %p254 = pneg %p78
      %p255 = pneg %p102
      %p256 = pneg %p99
      %p257 = pneg %p123
      %p258 = pneg %p120
      %p259 = pneg %p144
      %p260 = pneg %p141
      %p261 = pneg %p165
      %p262 = pneg %p162
      %p263 = pneg %p191
      %p264 = pneg %p188
      %s265 = smul.u32 19, %s18
      %p266 = scmp.lt.s32.totalorder %s265, 37
      %s267 = scalar_select %p266, %s265, 37
      %s268 = smul.addr %s267, 8
      %s269 = scalar_lea.vmem %s7, %s268
      %s270 = smul.u32 19, %s18
      %p271 = scmp.lt.s32.totalorder %s270, 37
      %s272 = scalar_select %p271, %s270, 37
      %s273 = smul.addr %s272, 8
      %s274 = scalar_lea.vmem %s0, %s273
      %s275 = smul.u32 19, %s18
      %s276 = smul.u32 19, %s18
      %p277 = scmp.lt.s32.totalorder %s276, 37
      %s278 = scalar_select %p277, %s276, 37
      %s279 = smul.addr %s278, 8
      %s280 = scalar_lea.vmem %s7, %s279
      %s281 = smul.u32 19, %s18
      %v282 = vld [vmem:[%s274] sm:$0xff]
      %v283 = vld [vmem:[%s274 + $0x8] sm:$0xff]
      %v284 = vld [vmem:[%s274 + $0x10] sm:$0xff]
      %v285 = vld [vmem:[%s274 + $0x18] sm:$0xff]
      %v286 = vld [vmem:[%s274 + $0x20] sm:$0xff]
      %v287 = vld [vmem:[%s274 + $0x28] sm:$0xff]
      %v288 = vld [vmem:[%s274 + $0x30] sm:$0xff]
      %v289 = vld [vmem:[%s274 + $0x38] sm:$0xff]
      %v290 = vld [vmem:[%s274 + $0x40] sm:$0xff]
      %v291 = vld [vmem:[%s274 + $0x48] sm:$0xff]
      %v292 = vld [vmem:[%s274 + $0x50] sm:$0xff]
      %v293 = vld [vmem:[%s274 + $0x58] sm:$0xff]
      %v294 = vld [vmem:[%s274 + $0x60] sm:$0xff]
      %v295 = vld [vmem:[%s274 + $0x68] sm:$0xff]
      %v296 = vld [vmem:[%s274 + $0x70] sm:$0xff]
      %v297 = vld [vmem:[%s274 + $0x78] sm:$0xff]
      %v298 = vld [vmem:[%s274 + $0x80] sm:$0xff]
      %v299 = vld [vmem:[%s274 + $0x88] sm:$0xff]
      %v300 = vld [vmem:[%s274 + $0x90] sm:$0xff]
      %v301 = vld [vmem:[%s1] sm:$0xff]
      %v302 = vld [vmem:[%s2] sm:$0x1]
      %v304 = vlaneseq
      %v305 = vshrl.u32 %v304, 7
      %v306 = vsub.s32 0, %v305
      %v307 = vrot.slane %v302, %v306
      %vm309 = vcmask 64512
      %v311 = vsel %vm309, %v282, 0
      %v314 = vsel %vm309, %v283, 0
      %v317 = vsel %vm309, %v284, 0
      %v320 = vsel %vm309, %v285, 0
      %v323 = vsel %vm309, %v286, 0
      %v326 = vsel %vm309, %v287, 0
      %v329 = vsel %vm309, %v288, 0
      %v332 = vsel %vm309, %v289, 0
      %v335 = vsel %vm309, %v290, 0
      %v338 = vsel %vm309, %v291, 0
      %v341 = vsel %vm309, %v292, 0
      %v344 = vsel %vm309, %v293, 0
      %v347 = vsel %vm309, %v294, 0
      %v350 = vsel %vm309, %v295, 0
      %v353 = vsel %vm309, %v296, 0
      %v356 = vsel %vm309, %v297, 0
      %v359 = vsel %vm309, %v298, 0
      %v362 = vsel %vm309, %v299, 0
      %v365 = vsel %vm309, %v300, 0
      %367 = vmatprep.subr.mxu0 0.0
      %368 = vmatpush1.msra.mxu0 %v301
      %369 = vmatprep.subr.mxu0 0.0
      %370 = vmatpush1.msra.mxu0 0.0
      %371 = vmatprep.subr.mxu0 0.0
      %372 = vmatpush1.msra.mxu0 0.0
      %373 = vmatprep.subr.mxu0 0.0
      %374 = vmatpush1.msra.mxu0 0.0
      %375 = vmatprep.subr.mxu0 0.0
      %376 = vmatpush1.msra.mxu0 0.0
      %377 = vmatprep.subr.mxu0 0.0
      %378 = vmatpush1.msra.mxu0 0.0
      %379 = vmatprep.subr.mxu0 0.0
      %380 = vmatpush1.msra.mxu0 0.0
      %381 = vmatprep.subr.mxu0 0.0
      %382 = vmatpush1.msra.mxu0 0.0
      %383 = vmatprep.subr.mxu0 0.0
      %384 = vmatpush1.msra.mxu0 0.0
      %385 = vmatprep.subr.mxu0 0.0
      %386 = vmatpush1.msra.mxu0 0.0
      %387 = vmatprep.subr.mxu0 0.0
      %388 = vmatpush1.msra.mxu0 0.0
      %389 = vmatprep.subr.mxu0 0.0
      %390 = vmatpush1.msra.mxu0 0.0
      %391 = vmatprep.subr.mxu0 0.0
      %392 = vmatpush1.msra.mxu0 0.0
      %393 = vmatprep.subr.mxu0 0.0
      %394 = vmatpush1.msra.mxu0 0.0
      %395 = vmatprep.subr.mxu0 0.0
      %396 = vmatpush1.msra.mxu0 0.0
      %397 = vmatprep.subr.mxu0 0.0
      %398 = vmatpush1.msra.mxu0 0.0
      %399 = vmatprep.subr.mxu0 0.0
      %400 = vmatpush1.msra.mxu0 0.0
      %401 = vmatprep.subr.mxu0 0.0
      %402 = vmatpush1.msra.mxu0 0.0
      %403 = vmatprep.subr.mxu0 0.0
      %404 = vmatpush1.msra.mxu0 0.0
      %405 = vmatprep.subr.mxu0 0.0
      %406 = vmatpush1.msra.mxu0 0.0
      %407 = vmatprep.subr.mxu0 0.0
      %408 = vmatpush1.msra.mxu0 0.0
      %409 = vmatprep.subr.mxu0 0.0
      %410 = vmatpush1.msra.mxu0 0.0
      %411 = vmatprep.subr.mxu0 0.0
      %412 = vmatpush1.msra.mxu0 0.0
      %413 = vmatprep.subr.mxu0 0.0
      %414 = vmatpush1.msra.mxu0 0.0
      %415 = vmatprep.subr.mxu0 0.0
      %416 = vmatpush1.msra.mxu0 0.0
      %417 = vmatprep.subr.mxu0 0.0
      %418 = vmatpush1.msra.mxu0 0.0
      %419 = vmatprep.subr.mxu0 0.0
      %420 = vmatpush1.msra.mxu0 0.0
      %421 = vmatprep.subr.mxu0 0.0
      %422 = vmatpush1.msra.mxu0 0.0
      %423 = vmatprep.subr.mxu0 0.0
      %424 = vmatpush1.msra.mxu0 0.0
      %425 = vmatprep.subr.mxu0 0.0
      %426 = vmatpush1.msra.mxu0 0.0
      %427 = vmatprep.subr.mxu0 0.0
      %428 = vmatpush1.msra.mxu0 0.0
      %429 = vmatprep.subr.mxu0 0.0
      %430 = vmatpush1.msra.mxu0 0.0
      %431 = vmatprep.mubr.f32.mxu0 0.0
      %432 = vmatmul.mubr.f32.gmra.mrb[0].mxu0 %v311
      %v433 = vpop.f32.mrb[0].mxu0
      %v434 = vadd.f32 %v307, %v433
      %v435 = vpop.f32.mrb[0].mxu0
      %436 = vmatprep.mubr.f32.mxu0 0.0
      %437 = vmatmul.mubr.f32.gmra.mrb[0].mxu0 %v314
      %v438 = vpop.f32.mrb[0].mxu0
      %v439 = vadd.f32 %v307, %v438
      %v440 = vpop.f32.mrb[0].mxu0
      %441 = vmatprep.mubr.f32.mxu0 0.0
      %442 = vmatmul.mubr.f32.gmra.mrb[0].mxu0 %v317
      %v443 = vpop.f32.mrb[0].mxu0
      %v444 = vadd.f32 %v307, %v443
      %v445 = vpop.f32.mrb[0].mxu0
      %446 = vmatprep.mubr.f32.mxu0 0.0
      %447 = vmatmul.mubr.f32.gmra.mrb[0].mxu0 %v320
      %v448 = vpop.f32.mrb[0].mxu0
      %v449 = vadd.f32 %v307, %v448
      %v450 = vpop.f32.mrb[0].mxu0
      %451 = vmatprep.mubr.f32.mxu0 0.0
      %452 = vmatmul.mubr.f32.gmra.mrb[0].mxu0 %v323
      %v453 = vpop.f32.mrb[0].mxu0
      %v454 = vadd.f32 %v307, %v453
      %v455 = vpop.f32.mrb[0].mxu0
      %456 = vmatprep.mubr.f32.mxu0 0.0
      %457 = vmatmul.mubr.f32.gmra.mrb[0].mxu0 %v326
      %v458 = vpop.f32.mrb[0].mxu0
      %v459 = vadd.f32 %v307, %v458
      %v460 = vpop.f32.mrb[0].mxu0
      %461 = vmatprep.mubr.f32.mxu0 0.0
      %462 = vmatmul.mubr.f32.gmra.mrb[0].mxu0 %v329
      %v463 = vpop.f32.mrb[0].mxu0
      %v464 = vadd.f32 %v307, %v463
      %v465 = vpop.f32.mrb[0].mxu0
      %466 = vmatprep.mubr.f32.mxu0 0.0
      %467 = vmatmul.mubr.f32.gmra.mrb[0].mxu0 %v332
      %v468 = vpop.f32.mrb[0].mxu0
      %v469 = vadd.f32 %v307, %v468
      %v470 = vpop.f32.mrb[0].mxu0
      %471 = vmatprep.mubr.f32.mxu0 0.0
      %472 = vmatmul.mubr.f32.gmra.mrb[0].mxu0 %v335
      %v473 = vpop.f32.mrb[0].mxu0
      %v474 = vadd.f32 %v307, %v473
      %v475 = vpop.f32.mrb[0].mxu0
      %476 = vmatprep.mubr.f32.mxu0 0.0
      %477 = vmatmul.mubr.f32.gmra.mrb[0].mxu0 %v338
      %v478 = vpop.f32.mrb[0].mxu0
      %v479 = vadd.f32 %v307, %v478
      %v480 = vpop.f32.mrb[0].mxu0
      %481 = vmatprep.mubr.f32.mxu0 0.0
      %482 = vmatmul.mubr.f32.gmra.mrb[0].mxu0 %v341
      %v483 = vpop.f32.mrb[0].mxu0
      %v484 = vadd.f32 %v307, %v483
      %v485 = vpop.f32.mrb[0].mxu0
      %486 = vmatprep.mubr.f32.mxu0 0.0
      %487 = vmatmul.mubr.f32.gmra.mrb[0].mxu0 %v344
      %v488 = vpop.f32.mrb[0].mxu0
      %v489 = vadd.f32 %v307, %v488
      %v490 = vpop.f32.mrb[0].mxu0
      %491 = vmatprep.mubr.f32.mxu0 0.0
      %492 = vmatmul.mubr.f32.gmra.mrb[0].mxu0 %v347
      %v493 = vpop.f32.mrb[0].mxu0
      %v494 = vadd.f32 %v307, %v493
      %v495 = vpop.f32.mrb[0].mxu0
      %496 = vmatprep.mubr.f32.mxu0 0.0
      %497 = vmatmul.mubr.f32.gmra.mrb[0].mxu0 %v350
      %v498 = vpop.f32.mrb[0].mxu0
      %v499 = vadd.f32 %v307, %v498
      %v500 = vpop.f32.mrb[0].mxu0
      %501 = vmatprep.mubr.f32.mxu0 0.0
      %502 = vmatmul.mubr.f32.gmra.mrb[0].mxu0 %v353
      %v503 = vpop.f32.mrb[0].mxu0
      %v504 = vadd.f32 %v307, %v503
      %v505 = vpop.f32.mrb[0].mxu0
      %506 = vmatprep.mubr.f32.mxu0 0.0
      %507 = vmatmul.mubr.f32.gmra.mrb[0].mxu0 %v356
      %v508 = vpop.f32.mrb[0].mxu0
      %v509 = vadd.f32 %v307, %v508
      %v510 = vpop.f32.mrb[0].mxu0
      %511 = vmatprep.mubr.f32.mxu0 0.0
      %512 = vmatmul.mubr.f32.gmra.mrb[0].mxu0 %v359
      %v513 = vpop.f32.mrb[0].mxu0
      %v514 = vadd.f32 %v307, %v513
      %v515 = vpop.f32.mrb[0].mxu0
      %516 = vmatprep.mubr.f32.mxu0 0.0
      %517 = vmatmul.mubr.f32.gmra.mrb[0].mxu0 %v362
      %v518 = vpop.f32.mrb[0].mxu0
      %v519 = vadd.f32 %v307, %v518
      %v520 = vpop.f32.mrb[0].mxu0
      %521 = vmatprep.mubr.f32.mxu0 0.0
      %522 = vmatmul.mubr.f32.gmra.mrb[0].mxu0 %v365
      %v523 = vpop.f32.mrb[0].mxu0
      %v524 = vadd.f32 %v307, %v523
      %v525 = vpop.f32.mrb[0].mxu0
      %526 = vdwg.mxu0
      %v527 = vmax.f32 %v434, 0.0
      %v528 = vmax.f32 %v439, 0.0
      %v529 = vmax.f32 %v444, 0.0
      %v530 = vmax.f32 %v449, 0.0
      %v531 = vmax.f32 %v454, 0.0
      %v532 = vmax.f32 %v459, 0.0
      %v533 = vmax.f32 %v464, 0.0
      %v534 = vmax.f32 %v469, 0.0
      %v535 = vmax.f32 %v474, 0.0
      %v536 = vmax.f32 %v479, 0.0
      %v537 = vmax.f32 %v484, 0.0
      %v538 = vmax.f32 %v489, 0.0
      %v539 = vmax.f32 %v494, 0.0
      %v540 = vmax.f32 %v499, 0.0
      %v541 = vmax.f32 %v504, 0.0
      %v542 = vmax.f32 %v509, 0.0
      %v543 = vmax.f32 %v514, 0.0
      %v544 = vmax.f32 %v519, 0.0
      %v545 = vmax.f32 %v524, 0.0
      %v546 = vld [vmem:[%s3] sm:$0xff]
      %v547 = vld [vmem:[%s3 + $0x8] sm:$0xff]
      %v548 = vld [vmem:[%s3 + $0x10] sm:$0xff]
      %v549 = vld [vmem:[%s3 + $0x18] sm:$0xff]
      %v550 = vld [vmem:[%s4] sm:$0x1]
      %v552 = vlaneseq
      %v553 = vshrl.u32 %v552, 7
      %v554 = vsub.s32 0, %v553
      %v555 = vrot.slane %v550, %v554
      %vm557 = vcmask 261120
      %v559 = vsel %vm557, %v527, 0
      %v562 = vsel %vm557, %v528, 0
      %v565 = vsel %vm557, %v529, 0
      %v568 = vsel %vm557, %v530, 0
      %v571 = vsel %vm557, %v531, 0
      %v574 = vsel %vm557, %v532, 0
      %v577 = vsel %vm557, %v533, 0
      %v580 = vsel %vm557, %v534, 0
      %v583 = vsel %vm557, %v535, 0
      %v586 = vsel %vm557, %v536, 0
      %v589 = vsel %vm557, %v537, 0
      %v592 = vsel %vm557, %v538, 0
      %v595 = vsel %vm557, %v539, 0
      %v598 = vsel %vm557, %v540, 0
      %v601 = vsel %vm557, %v541, 0
      %v604 = vsel %vm557, %v542, 0
      %v607 = vsel %vm557, %v543, 0
      %v610 = vsel %vm557, %v544, 0
      %v613 = vsel %vm557, %v545, 0
      %615 = vmatprep.subr.mxu0 0.0
      %616 = vmatpush1.msra.mxu0 %v546
      %617 = vmatprep.subr.mxu0 0.0
      %618 = vmatpush1.msra.mxu0 %v547
      %619 = vmatprep.subr.mxu0 0.0
      %620 = vmatpush1.msra.mxu0 %v548
      %621 = vmatprep.subr.mxu0 0.0
      %622 = vmatpush1.msra.mxu0 %v549
      %623 = vmatprep.subr.mxu0 0.0
      %624 = vmatpush1.msra.mxu0 0.0
      %625 = vmatprep.subr.mxu0 0.0
      %626 = vmatpush1.msra.mxu0 0.0
      %627 = vmatprep.subr.mxu0 0.0
      %628 = vmatpush1.msra.mxu0 0.0
      %629 = vmatprep.subr.mxu0 0.0
      %630 = vmatpush1.msra.mxu0 0.0
      %631 = vmatprep.subr.mxu0 0.0
      %632 = vmatpush1.msra.mxu0 0.0
      %633 = vmatprep.subr.mxu0 0.0
      %634 = vmatpush1.msra.mxu0 0.0
      %635 = vmatprep.subr.mxu0 0.0
      %636 = vmatpush1.msra.mxu0 0.0
      %637 = vmatprep.subr.mxu0 0.0
      %638 = vmatpush1.msra.mxu0 0.0
      %639 = vmatprep.subr.mxu0 0.0
      %640 = vmatpush1.msra.mxu0 0.0
      %641 = vmatprep.subr.mxu0 0.0
      %642 = vmatpush1.msra.mxu0 0.0
      %643 = vmatprep.subr.mxu0 0.0
      %644 = vmatpush1.msra.mxu0 0.0
      %645 = vmatprep.subr.mxu0 0.0
      %646 = vmatpush1.msra.mxu0 0.0
      %647 = vmatprep.subr.mxu0 0.0
      %648 = vmatpush1.msra.mxu0 0.0
      %649 = vmatprep.subr.mxu0 0.0
      %650 = vmatpush1.msra.mxu0 0.0
      %651 = vmatprep.subr.mxu0 0.0
      %652 = vmatpush1.msra.mxu0 0.0
      %653 = vmatprep.subr.mxu0 0.0
      %654 = vmatpush1.msra.mxu0 0.0
      %655 = vmatprep.subr.mxu0 0.0
      %656 = vmatpush1.msra.mxu0 0.0
      %657 = vmatprep.subr.mxu0 0.0
      %658 = vmatpush1.msra.mxu0 0.0
      %659 = vmatprep.subr.mxu0 0.0
      %660 = vmatpush1.msra.mxu0 0.0
      %661 = vmatprep.subr.mxu0 0.0
      %662 = vmatpush1.msra.mxu0 0.0
      %663 = vmatprep.subr.mxu0 0.0
      %664 = vmatpush1.msra.mxu0 0.0
      %665 = vmatprep.subr.mxu0 0.0
      %666 = vmatpush1.msra.mxu0 0.0
      %667 = vmatprep.subr.mxu0 0.0
      %668 = vmatpush1.msra.mxu0 0.0
      %669 = vmatprep.subr.mxu0 0.0
      %670 = vmatpush1.msra.mxu0 0.0
      %671 = vmatprep.subr.mxu0 0.0
      %672 = vmatpush1.msra.mxu0 0.0
      %673 = vmatprep.subr.mxu0 0.0
      %674 = vmatpush1.msra.mxu0 0.0
      %675 = vmatprep.subr.mxu0 0.0
      %676 = vmatpush1.msra.mxu0 0.0
      %677 = vmatprep.subr.mxu0 0.0
      %678 = vmatpush1.msra.mxu0 0.0
      %679 = vmatprep.mubr.f32.mxu0 0.0
      %680 = vmatmul.mubr.f32.gmra.mrb[0].mxu0 %v559
      %v681 = vpop.f32.mrb[0].mxu0
      %v682 = vadd.f32 %v555, %v681
      %v683 = vpop.f32.mrb[0].mxu0
      %684 = vmatprep.mubr.f32.mxu0 0.0
      %685 = vmatmul.mubr.f32.gmra.mrb[0].mxu0 %v562
      %v686 = vpop.f32.mrb[0].mxu0
      %v687 = vadd.f32 %v555, %v686
      %v688 = vpop.f32.mrb[0].mxu0
      %689 = vmatprep.mubr.f32.mxu0 0.0
      %690 = vmatmul.mubr.f32.gmra.mrb[0].mxu0 %v565
      %v691 = vpop.f32.mrb[0].mxu0
      %v692 = vadd.f32 %v555, %v691
      %v693 = vpop.f32.mrb[0].mxu0
      %694 = vmatprep.mubr.f32.mxu0 0.0
      %695 = vmatmul.mubr.f32.gmra.mrb[0].mxu0 %v568
      %v696 = vpop.f32.mrb[0].mxu0
      %v697 = vadd.f32 %v555, %v696
      %v698 = vpop.f32.mrb[0].mxu0
      %699 = vmatprep.mubr.f32.mxu0 0.0
      %700 = vmatmul.mubr.f32.gmra.mrb[0].mxu0 %v571
      %v701 = vpop.f32.mrb[0].mxu0
      %v702 = vadd.f32 %v555, %v701
      %v703 = vpop.f32.mrb[0].mxu0
      %704 = vmatprep.mubr.f32.mxu0 0.0
      %705 = vmatmul.mubr.f32.gmra.mrb[0].mxu0 %v574
      %v706 = vpop.f32.mrb[0].mxu0
      %v707 = vadd.f32 %v555, %v706
      %v708 = vpop.f32.mrb[0].mxu0
      %709 = vmatprep.mubr.f32.mxu0 0.0
      %710 = vmatmul.mubr.f32.gmra.mrb[0].mxu0 %v577
      %v711 = vpop.f32.mrb[0].mxu0
      %v712 = vadd.f32 %v555, %v711
      %v713 = vpop.f32.mrb[0].mxu0
      %714 = vmatprep.mubr.f32.mxu0 0.0
      %715 = vmatmul.mubr.f32.gmra.mrb[0].mxu0 %v580
      %v716 = vpop.f32.mrb[0].mxu0
      %v717 = vadd.f32 %v555, %v716
      %v718 = vpop.f32.mrb[0].mxu0
      %719 = vmatprep.mubr.f32.mxu0 0.0
      %720 = vmatmul.mubr.f32.gmra.mrb[0].mxu0 %v583
      %v721 = vpop.f32.mrb[0].mxu0
      %v722 = vadd.f32 %v555, %v721
      %v723 = vpop.f32.mrb[0].mxu0
      %724 = vmatprep.mubr.f32.mxu0 0.0
      %725 = vmatmul.mubr.f32.gmra.mrb[0].mxu0 %v586
      %v726 = vpop.f32.mrb[0].mxu0
      %v727 = vadd.f32 %v555, %v726
      %v728 = vpop.f32.mrb[0].mxu0
      %729 = vmatprep.mubr.f32.mxu0 0.0
      %730 = vmatmul.mubr.f32.gmra.mrb[0].mxu0 %v589
      %v731 = vpop.f32.mrb[0].mxu0
      %v732 = vadd.f32 %v555, %v731
      %v733 = vpop.f32.mrb[0].mxu0
      %734 = vmatprep.mubr.f32.mxu0 0.0
      %735 = vmatmul.mubr.f32.gmra.mrb[0].mxu0 %v592
      %v736 = vpop.f32.mrb[0].mxu0
      %v737 = vadd.f32 %v555, %v736
      %v738 = vpop.f32.mrb[0].mxu0
      %739 = vmatprep.mubr.f32.mxu0 0.0
      %740 = vmatmul.mubr.f32.gmra.mrb[0].mxu0 %v595
      %v741 = vpop.f32.mrb[0].mxu0
      %v742 = vadd.f32 %v555, %v741
      %v743 = vpop.f32.mrb[0].mxu0
      %744 = vmatprep.mubr.f32.mxu0 0.0
      %745 = vmatmul.mubr.f32.gmra.mrb[0].mxu0 %v598
      %v746 = vpop.f32.mrb[0].mxu0
      %v747 = vadd.f32 %v555, %v746
      %v748 = vpop.f32.mrb[0].mxu0
      %749 = vmatprep.mubr.f32.mxu0 0.0
      %750 = vmatmul.mubr.f32.gmra.mrb[0].mxu0 %v601
      %v751 = vpop.f32.mrb[0].mxu0
      %v752 = vadd.f32 %v555, %v751
      %v753 = vpop.f32.mrb[0].mxu0
      %754 = vmatprep.mubr.f32.mxu0 0.0
      %755 = vmatmul.mubr.f32.gmra.mrb[0].mxu0 %v604
      %v756 = vpop.f32.mrb[0].mxu0
      %v757 = vadd.f32 %v555, %v756
      %v758 = vpop.f32.mrb[0].mxu0
      %759 = vmatprep.mubr.f32.mxu0 0.0
      %760 = vmatmul.mubr.f32.gmra.mrb[0].mxu0 %v607
      %v761 = vpop.f32.mrb[0].mxu0
      %v762 = vadd.f32 %v555, %v761
      %v763 = vpop.f32.mrb[0].mxu0
      %764 = vmatprep.mubr.f32.mxu0 0.0
      %765 = vmatmul.mubr.f32.gmra.mrb[0].mxu0 %v610
      %v766 = vpop.f32.mrb[0].mxu0
      %v767 = vadd.f32 %v555, %v766
      %v768 = vpop.f32.mrb[0].mxu0
      %769 = vmatprep.mubr.f32.mxu0 0.0
      %770 = vmatmul.mubr.f32.gmra.mrb[0].mxu0 %v613
      %v771 = vpop.f32.mrb[0].mxu0
      %v772 = vadd.f32 %v555, %v771
      %v773 = vpop.f32.mrb[0].mxu0
      %774 = vdwg.mxu0
      %v775 = vmax.f32 %v682, 0.0
      %v776 = vmax.f32 %v687, 0.0
      %v777 = vmax.f32 %v692, 0.0
      %v778 = vmax.f32 %v697, 0.0
      %v779 = vmax.f32 %v702, 0.0
      %v780 = vmax.f32 %v707, 0.0
      %v781 = vmax.f32 %v712, 0.0
      %v782 = vmax.f32 %v717, 0.0
      %v783 = vmax.f32 %v722, 0.0
      %v784 = vmax.f32 %v727, 0.0
      %v785 = vmax.f32 %v732, 0.0
      %v786 = vmax.f32 %v737, 0.0
      %v787 = vmax.f32 %v742, 0.0
      %v788 = vmax.f32 %v747, 0.0
      %v789 = vmax.f32 %v752, 0.0
      %v790 = vmax.f32 %v757, 0.0
      %v791 = vmax.f32 %v762, 0.0
      %v792 = vmax.f32 %v767, 0.0
      %v793 = vmax.f32 %v772, 0.0
      %v794 = vld [vmem:[%s5] sm:$0xff]
      %v795 = vld [vmem:[%s5 + $0x8] sm:$0xff]
      %v796 = vld [vmem:[%s5 + $0x10] sm:$0xff]
      %v797 = vld [vmem:[%s6] sm:$0x1]
      %v799 = vlaneseq
      %v800 = vshrl.u32 %v799, 7
      %v801 = vsub.s32 0, %v800
      %v802 = vrot.slane %v797, %v801
      %vm804 = vcmask 195584
      %v806 = vsel %vm804, %v775, 0
      %v809 = vsel %vm804, %v776, 0
      %v812 = vsel %vm804, %v777, 0
      %v815 = vsel %vm804, %v778, 0
      %v818 = vsel %vm804, %v779, 0
      %v821 = vsel %vm804, %v780, 0
      %v824 = vsel %vm804, %v781, 0
      %v827 = vsel %vm804, %v782, 0
      %v830 = vsel %vm804, %v783, 0
      %v833 = vsel %vm804, %v784, 0
      %v836 = vsel %vm804, %v785, 0
      %v839 = vsel %vm804, %v786, 0
      %v842 = vsel %vm804, %v787, 0
      %v845 = vsel %vm804, %v788, 0
      %v848 = vsel %vm804, %v789, 0
      %v851 = vsel %vm804, %v790, 0
      %v854 = vsel %vm804, %v791, 0
      %v857 = vsel %vm804, %v792, 0
      %v860 = vsel %vm804, %v793, 0
      %862 = vmatprep.subr.mxu0 0.0
      %863 = vmatpush1.msra.mxu0 %v794
      %864 = vmatprep.subr.mxu0 0.0
      %865 = vmatpush1.msra.mxu0 %v795
      %866 = vmatprep.subr.mxu0 0.0
      %867 = vmatpush1.msra.mxu0 %v796
      %868 = vmatprep.subr.mxu0 0.0
      %869 = vmatpush1.msra.mxu0 0.0
      %870 = vmatprep.subr.mxu0 0.0
      %871 = vmatpush1.msra.mxu0 0.0
      %872 = vmatprep.subr.mxu0 0.0
      %873 = vmatpush1.msra.mxu0 0.0
      %874 = vmatprep.subr.mxu0 0.0
      %875 = vmatpush1.msra.mxu0 0.0
      %876 = vmatprep.subr.mxu0 0.0
      %877 = vmatpush1.msra.mxu0 0.0
      %878 = vmatprep.subr.mxu0 0.0
      %879 = vmatpush1.msra.mxu0 0.0
      %880 = vmatprep.subr.mxu0 0.0
      %881 = vmatpush1.msra.mxu0 0.0
      %882 = vmatprep.subr.mxu0 0.0
      %883 = vmatpush1.msra.mxu0 0.0
      %884 = vmatprep.subr.mxu0 0.0
      %885 = vmatpush1.msra.mxu0 0.0
      %886 = vmatprep.subr.mxu0 0.0
      %887 = vmatpush1.msra.mxu0 0.0
      %888 = vmatprep.subr.mxu0 0.0
      %889 = vmatpush1.msra.mxu0 0.0
      %890 = vmatprep.subr.mxu0 0.0
      %891 = vmatpush1.msra.mxu0 0.0
      %892 = vmatprep.subr.mxu0 0.0
      %893 = vmatpush1.msra.mxu0 0.0
      %894 = vmatprep.subr.mxu0 0.0
      %895 = vmatpush1.msra.mxu0 0.0
      %896 = vmatprep.subr.mxu0 0.0
      %897 = vmatpush1.msra.mxu0 0.0
      %898 = vmatprep.subr.mxu0 0.0
      %899 = vmatpush1.msra.mxu0 0.0
      %900 = vmatprep.subr.mxu0 0.0
      %901 = vmatpush1.msra.mxu0 0.0
      %902 = vmatprep.subr.mxu0 0.0
      %903 = vmatpush1.msra.mxu0 0.0
      %904 = vmatprep.subr.mxu0 0.0
      %905 = vmatpush1.msra.mxu0 0.0
      %906 = vmatprep.subr.mxu0 0.0
      %907 = vmatpush1.msra.mxu0 0.0
      %908 = vmatprep.subr.mxu0 0.0
      %909 = vmatpush1.msra.mxu0 0.0
      %910 = vmatprep.subr.mxu0 0.0
      %911 = vmatpush1.msra.mxu0 0.0
      %912 = vmatprep.subr.mxu0 0.0
      %913 = vmatpush1.msra.mxu0 0.0
      %914 = vmatprep.subr.mxu0 0.0
      %915 = vmatpush1.msra.mxu0 0.0
      %916 = vmatprep.subr.mxu0 0.0
      %917 = vmatpush1.msra.mxu0 0.0
      %918 = vmatprep.subr.mxu0 0.0
      %919 = vmatpush1.msra.mxu0 0.0
      %920 = vmatprep.subr.mxu0 0.0
      %921 = vmatpush1.msra.mxu0 0.0
      %922 = vmatprep.subr.mxu0 0.0
      %923 = vmatpush1.msra.mxu0 0.0
      %924 = vmatprep.subr.mxu0 0.0
      %925 = vmatpush1.msra.mxu0 0.0
      %926 = vmatprep.mubr.f32.mxu0 0.0
      %927 = vmatmul.mubr.f32.gmra.mrb[0].mxu0 %v806
      %v928 = vpop.f32.mrb[0].mxu0
      %v929 = vadd.f32 %v802, %v928
      %v930 = vpop.f32.mrb[0].mxu0
      %931 = vmatprep.mubr.f32.mxu0 0.0
      %932 = vmatmul.mubr.f32.gmra.mrb[0].mxu0 %v809
      %v933 = vpop.f32.mrb[0].mxu0
      %v934 = vadd.f32 %v802, %v933
      %v935 = vpop.f32.mrb[0].mxu0
      %936 = vmatprep.mubr.f32.mxu0 0.0
      %937 = vmatmul.mubr.f32.gmra.mrb[0].mxu0 %v812
      %v938 = vpop.f32.mrb[0].mxu0
      %v939 = vadd.f32 %v802, %v938
      %v940 = vpop.f32.mrb[0].mxu0
      %941 = vmatprep.mubr.f32.mxu0 0.0
      %942 = vmatmul.mubr.f32.gmra.mrb[0].mxu0 %v815
      %v943 = vpop.f32.mrb[0].mxu0
      %v944 = vadd.f32 %v802, %v943
      %v945 = vpop.f32.mrb[0].mxu0
      %946 = vmatprep.mubr.f32.mxu0 0.0
      %947 = vmatmul.mubr.f32.gmra.mrb[0].mxu0 %v818
      %v948 = vpop.f32.mrb[0].mxu0
      %v949 = vadd.f32 %v802, %v948
      %v950 = vpop.f32.mrb[0].mxu0
      %951 = vmatprep.mubr.f32.mxu0 0.0
      %952 = vmatmul.mubr.f32.gmra.mrb[0].mxu0 %v821
      %v953 = vpop.f32.mrb[0].mxu0
      %v954 = vadd.f32 %v802, %v953
      %v955 = vpop.f32.mrb[0].mxu0
      %956 = vmatprep.mubr.f32.mxu0 0.0
      %957 = vmatmul.mubr.f32.gmra.mrb[0].mxu0 %v824
      %v958 = vpop.f32.mrb[0].mxu0
      %v959 = vadd.f32 %v802, %v958
      %v960 = vpop.f32.mrb[0].mxu0
      %961 = vmatprep.mubr.f32.mxu0 0.0
      %962 = vmatmul.mubr.f32.gmra.mrb[0].mxu0 %v827
      %v963 = vpop.f32.mrb[0].mxu0
      %v964 = vadd.f32 %v802, %v963
      %v965 = vpop.f32.mrb[0].mxu0
      %966 = vmatprep.mubr.f32.mxu0 0.0
      %967 = vmatmul.mubr.f32.gmra.mrb[0].mxu0 %v830
      %v968 = vpop.f32.mrb[0].mxu0
      %v969 = vadd.f32 %v802, %v968
      %v970 = vpop.f32.mrb[0].mxu0
      %971 = vmatprep.mubr.f32.mxu0 0.0
      %972 = vmatmul.mubr.f32.gmra.mrb[0].mxu0 %v833
      %v973 = vpop.f32.mrb[0].mxu0
      %v974 = vadd.f32 %v802, %v973
      %v975 = vpop.f32.mrb[0].mxu0
      %976 = vmatprep.mubr.f32.mxu0 0.0
      %977 = vmatmul.mubr.f32.gmra.mrb[0].mxu0 %v836
      %v978 = vpop.f32.mrb[0].mxu0
      %v979 = vadd.f32 %v802, %v978
      %v980 = vpop.f32.mrb[0].mxu0
      %981 = vmatprep.mubr.f32.mxu0 0.0
      %982 = vmatmul.mubr.f32.gmra.mrb[0].mxu0 %v839
      %v983 = vpop.f32.mrb[0].mxu0
      %v984 = vadd.f32 %v802, %v983
      %v985 = vpop.f32.mrb[0].mxu0
      %986 = vmatprep.mubr.f32.mxu0 0.0
      %987 = vmatmul.mubr.f32.gmra.mrb[0].mxu0 %v842
      %v988 = vpop.f32.mrb[0].mxu0
      %v989 = vadd.f32 %v802, %v988
      %v990 = vpop.f32.mrb[0].mxu0
      %991 = vmatprep.mubr.f32.mxu0 0.0
      %992 = vmatmul.mubr.f32.gmra.mrb[0].mxu0 %v845
      %v993 = vpop.f32.mrb[0].mxu0
      %v994 = vadd.f32 %v802, %v993
      %v995 = vpop.f32.mrb[0].mxu0
      %996 = vmatprep.mubr.f32.mxu0 0.0
      %997 = vmatmul.mubr.f32.gmra.mrb[0].mxu0 %v848
      %v998 = vpop.f32.mrb[0].mxu0
      %v999 = vadd.f32 %v802, %v998
      %v1000 = vpop.f32.mrb[0].mxu0
      %1001 = vmatprep.mubr.f32.mxu0 0.0
      %1002 = vmatmul.mubr.f32.gmra.mrb[0].mxu0 %v851
      %v1003 = vpop.f32.mrb[0].mxu0
      %v1004 = vadd.f32 %v802, %v1003
      %v1005 = vpop.f32.mrb[0].mxu0
      %1006 = vmatprep.mubr.f32.mxu0 0.0
      %1007 = vmatmul.mubr.f32.gmra.mrb[0].mxu0 %v854
      %v1008 = vpop.f32.mrb[0].mxu0
      %v1009 = vadd.f32 %v802, %v1008
      %v1010 = vpop.f32.mrb[0].mxu0
      %1011 = vmatprep.mubr.f32.mxu0 0.0
      %1012 = vmatmul.mubr.f32.gmra.mrb[0].mxu0 %v857
      %v1013 = vpop.f32.mrb[0].mxu0
      %v1014 = vadd.f32 %v802, %v1013
      %v1015 = vpop.f32.mrb[0].mxu0
      %1016 = vmatprep.mubr.f32.mxu0 0.0
      %1017 = vmatmul.mubr.f32.gmra.mrb[0].mxu0 %v860
      %v1018 = vpop.f32.mrb[0].mxu0
      %v1019 = vadd.f32 %v802, %v1018
      %v1020 = vpop.f32.mrb[0].mxu0
      %1021 = vdwg.mxu0
      %1022 = vst.msk [vmem:[%s280] sm:$0xff] %vm309, %v929
      %1023 = vst.msk [vmem:[%s280 + $0x8] sm:$0xff] %vm309, %v934
      %1024 = vst.msk [vmem:[%s280 + $0x10] sm:$0xff] %vm309, %v939
      %1025 = vst.msk [vmem:[%s280 + $0x18] sm:$0xff] %vm309, %v944
      %1026 = vst.msk [vmem:[%s280 + $0x20] sm:$0xff] %vm309, %v949
      %1027 = vst.msk [vmem:[%s280 + $0x28] sm:$0xff] %vm309, %v954
      %1028 = vst.msk [vmem:[%s280 + $0x30] sm:$0xff] %vm309, %v959
      %1029 = vst.msk [vmem:[%s280 + $0x38] sm:$0xff] %vm309, %v964
      %1030 = vst.msk [vmem:[%s280 + $0x40] sm:$0xff] %vm309, %v969
      %1031 = vst.msk [vmem:[%s280 + $0x48] sm:$0xff] %vm309, %v974
      %1032 = vst.msk [vmem:[%s280 + $0x50] sm:$0xff] %vm309, %v979
      %1033 = vst.msk [vmem:[%s280 + $0x58] sm:$0xff] %vm309, %v984
      %1034 = vst.msk [vmem:[%s280 + $0x60] sm:$0xff] %vm309, %v989
      %1035 = vst.msk [vmem:[%s280 + $0x68] sm:$0xff] %vm309, %v994
      %1036 = vst.msk [vmem:[%s280 + $0x70] sm:$0xff] %vm309, %v999
      %1037 = vst.msk [vmem:[%s280 + $0x78] sm:$0xff] %vm309, %v1004
      %1038 = vst.msk [vmem:[%s280 + $0x80] sm:$0xff] %vm309, %v1009
      %1039 = vst.msk [vmem:[%s280 + $0x88] sm:$0xff] %vm309, %v1014
      %1040 = vst.msk [vmem:[%s280 + $0x90] sm:$0xff] %vm309, %v1019
      %s1041 = smul.u32 19, %s18
      %p1042 = scmp.lt.s32.totalorder %s1041, 37
      %s1043 = scalar_select %p1042, %s1041, 37
      %s1044 = smul.addr %s1043, 8
      %s1045 = scalar_lea.vmem %s7, %s1044
      // Predicated region
      $region49: #{tpu_custom_call.1} parent=47 // pred_check
        %p1046 = pneg %p188
      $region50: #{tpu_custom_call.1} parent=47 // pred_check_branch
        %1048 = sbr.rel (%p1046) target = $region52
      $region51: #{tpu_custom_call.1} parent=47 // pred_region
        %s1049 = smul.u32 19, %s18
      $region52: #{tpu_custom_call.1} parent=47 // pred_fallthru
        _
    $region48: #{tpu_custom_call.1} parent=5 // pred_fallthru
      _
    %p1050 = scmp.le.s32.totalorder 2, %s13
    // Predicated region
    $region53: #{tpu_custom_call.1} parent=5 // pred_check
      %p1051 = pneg %p1050
    $region54: #{tpu_custom_call.1} parent=5 // pred_check_branch
      %1053 = sbr.rel (%p1051) target = $region56
    $region55: #{tpu_custom_call.1} parent=5 // pred_region
      %s1054 = ssub.s32 %s13, 2
      // Predicated region
      $region57: #{tpu_custom_call.1} parent=55 // pred_check
        %p1055 = pneg %p194
      $region58: #{tpu_custom_call.1} parent=55 // pred_check_branch
        %1057 = sbr.rel (%p1055) target = $region60
      $region59: #{tpu_custom_call.1} parent=55 // pred_region
        %s1058 = smul.u32 19, %s19
        %p1059 = scmp.lt.s32.totalorder %s1058, 37
        %s1060 = scalar_select %p1059, %s1058, 37
        %s1061 = smul.addr %s1060, 8
        %s1062 = scalar_lea.vmem %s7, %s1061
      $region60: #{tpu_custom_call.1} parent=55 // pred_fallthru
        _
    $region56: #{tpu_custom_call.1} parent=5 // pred_fallthru
      _
  $region6: #{tpu_custom_call.1} parent=0 // loop_footer
    %s17 = sadd.s32 1, %s13
  $region7: #{tpu_custom_call.1} parent=0 // loop_footer_branch
    %12 = sbr.rel target = $region3
  $region8: #{tpu_custom_call.1} parent=0 // loop_exit
    _

</llo_original>
